<compile_context>
chip_gen: v5e
topology: v5e:2x2
jax: 0.10.0
libtpu: 0.0.40
codegen_flags: <defaults>
</compile_context>

<pallas_src>
import math
import jax
import jax.numpy as jnp
from jax import lax
from jax.experimental import pallas as pl
from jax.experimental.pallas import tpu as pltpu


_NEG_FILL = -1e30  # finite "-inf" for K padding (avoids NaN from (-inf) - (-inf))


# --------------------------------------------------------------------------
# Kernels
# --------------------------------------------------------------------------
def _softmax_rows_kernel(w_ref, o_ref):
    """Numerically-stable softmax over the last (lane) axis of a [rows, k_p] tile.

    K-padding lanes are pre-filled with a large negative constant, so
    exp(pad - max) underflows to exactly 0 and contributes nothing to the sum.
    """
    w = w_ref[...].astype(jnp.float32)                       # [rows, k_p]
    w_max = jnp.max(w, axis=-1, keepdims=True)
    e = jnp.exp(w - w_max)
    denom = jnp.sum(e, axis=-1, keepdims=True)
    inv = pl.reciprocal(denom, approx=True)                  # EUP slot, ~free
    o_ref[...] = (e * inv).astype(o_ref.dtype)               # -> bf16 for MXU


def _wl_matmul_single_k_kernel(x_ref, w_ref, o_ref):
    """Single-K-step matmul (full K resident in VMEM): no accumulator needed."""
    o_ref[...] = lax.dot_general(
        x_ref[...], w_ref[...],
        dimension_numbers=(((1,), (1,)), ((), ())),          # contract lane dims
        preferred_element_type=jnp.float32,
    ).astype(o_ref.dtype)


def _wl_matmul_acc_out_kernel(x_ref, w_ref, o_ref):
    """Tiled-K matmul accumulating straight into the (f32) output block."""
    @pl.when(pl.program_id(2) == 0)
    def _():
        o_ref[...] = jnp.zeros_like(o_ref)

    o_ref[...] += lax.dot_general(
        x_ref[...], w_ref[...],
        dimension_numbers=(((1,), (1,)), ((), ())),
        preferred_element_type=jnp.float32,
    )


def _wl_matmul_acc_scratch_kernel(x_ref, w_ref, o_ref, acc_ref):
    """Tiled-K matmul with f32 VMEM accumulator (for non-f32 output dtypes)."""
    @pl.when(pl.program_id(2) == 0)
    def _():
        acc_ref[...] = jnp.zeros_like(acc_ref)

    acc_ref[...] += lax.dot_general(
        x_ref[...], w_ref[...],
        dimension_numbers=(((1,), (1,)), ((), ())),
        preferred_element_type=jnp.float32,
    )

    @pl.when(pl.program_id(2) == pl.num_programs(2) - 1)
    def _():
        o_ref[...] = acc_ref[...].astype(o_ref.dtype)


# --------------------------------------------------------------------------
# Planning helpers
# --------------------------------------------------------------------------
def _round_up(a, b):
    return ((a + b - 1) // b) * b


def _choose_tile(dim, align, preferred):
    """Pick the tile first (aligned, capped at `preferred`), then pad the dim."""
    preferred = max(align, _round_up(preferred, align))
    tile = min(preferred, _round_up(dim, align))
    padded = _round_up(dim, tile)
    return tile, padded


def _vmem_budget_bytes():
    """Per-core VMEM planning budget (~70% of capacity, capped)."""
    cap = 64 * 1024 * 1024          # safe fallback (v7x has 64 MiB per TC)
    try:
        info = pltpu.get_tpu_info()
        cap = int(getattr(info, "vmem_capacity_bytes", cap))
    except Exception:
        pass
    return int(min(cap * 0.7, 96 * 1024 * 1024))


def _softmax_rows_tile(n_p, k_p, budget):
    """Rows per softmax tile so 2x f32 in + 2x bf16 out + f32 temps fit VMEM."""
    per_row = k_p * (2 * 4 + 2 * 2 + 2 * 4)
    rows = 8
    for cand in (16, 32, 64, 128, 256, 512, 1024):
        if n_p % cand == 0 and cand * per_row <= budget:
            rows = cand
    return rows


# --------------------------------------------------------------------------
# Wrapper
# --------------------------------------------------------------------------
def weighted_linear(x, weight, *, tm=1024, tn=1024, tk=512,
                    mxu_dtype=jnp.bfloat16):
    """x: [..., in_features], weight: [out_features, in_features].

    Computes F.linear(x, softmax(weight, axis=-1)).
    Softmax math stays in f32; the MXU sees bf16 operands with f32 accumulation.
    """
    out_features, in_features = weight.shape
    lead_shape = x.shape[:-1]
    x2d = x.reshape((-1, in_features))
    m = x2d.shape[0]

    out_dtype = x.dtype
    out_bytes = jnp.dtype(out_dtype).itemsize
    mxu_bytes = jnp.dtype(mxu_dtype).itemsize
    w_bytes = jnp.dtype(weight.dtype).itemsize

    budget = _vmem_budget_bytes()

    # --- tile planning: pick large tiles, pad dims up to them ---------------
    tm_, m_p = _choose_tile(m, 16, tm)                 # M aligned to 16 (bf16)
    tn_, n_p = _choose_tile(out_features, 128, tn)     # N lane-dense

    # v7x megacore: prefer >= 2 blocks along a parallel axis so both TCs work.
    if (m_p // tm_) * (n_p // tn_) == 1:
        if tn_ >= 256:
            tn_ //= 2
        elif tm_ >= 32:
            tm_ //= 2

    k_full = _round_up(in_features, 128)

    # K-collapse: if both full-K operand tiles fit double-buffered in VMEM,
    # collapse the K grid axis (resident operand is DMA'd exactly once).
    collapse_fp = (2 * tm_ * k_full * mxu_bytes
                   + 2 * tn_ * k_full * mxu_bytes
                   + 2 * tm_ * tn_ * out_bytes)
    collapse_k = collapse_fp <= budget

    if collapse_k:
        tk_, k_p = k_full, k_full
    else:
        tk_, k_p = _choose_tile(in_features, 128, tk)

        def _fp(a, b, c):
            acc = 0 if out_dtype == jnp.float32 else a * b * 4
            return (2 * a * c * mxu_bytes + 2 * b * c * mxu_bytes
                    + 2 * a * b * out_bytes + acc)

        # Shrink tiles until the double-buffered footprint fits the budget.
        while _fp(tm_, tn_, tk_) > budget:
            if tm_ > 16 and tm_ >= tn_ and tm_ >= tk_:
                tm_ //= 2
            elif tn_ > 128 and tn_ >= tk_:
                tn_ //= 2
            elif tk_ > 128:
                tk_ //= 2
            else:
                break
        m_p = _round_up(m, tm_)
        n_p = _round_up(out_features, tn_)
        k_p = _round_up(in_features, tk_)

    # --- 1) softmax over weight rows, K padding folded in -------------------
    rows_t = _softmax_rows_tile(n_p, k_p, budget)
    w_pad = jnp.pad(
        weight,
        ((0, n_p - out_features), (0, k_p - in_features)),
        constant_values=_NEG_FILL,
    )
    w_soft = pl.pallas_call(
        _softmax_rows_kernel,
        out_shape=jax.ShapeDtypeStruct((n_p, k_p), mxu_dtype),
        grid=(n_p // rows_t,),
        in_specs=[pl.BlockSpec((rows_t, k_p), lambda i: (i, 0))],
        out_specs=pl.BlockSpec((rows_t, k_p), lambda i: (i, 0)),
        compiler_params=pltpu.CompilerParams(
            dimension_semantics=("parallel",),
            vmem_limit_bytes=budget),
        cost_estimate=pl.CostEstimate(
            flops=4 * n_p * k_p,
            transcendentals=n_p * k_p,
            bytes_accessed=n_p * k_p * (w_bytes + mxu_bytes)),
    )(w_pad)

    # --- 2) pad + cast x in one fused XLA op (zero K padding is inert) ------
    x_p = jnp.pad(x2d, ((0, m_p - m), (0, k_p - in_features))).astype(mxu_dtype)

    # --- 3) matmul -----------------------------------------------------------
    flops = 2 * m_p * n_p * k_p
    if collapse_k:
        gi, gj = m_p // tm_, n_p // tn_
        # Pick grid order so the more expensive-to-restream operand is resident.
        total_a = m_p * k_p + n_p * k_p * gi          # x resident, w streamed
        total_b = n_p * k_p + m_p * k_p * gj          # w resident, x streamed
        if total_a <= total_b:
            grid = (gi, gj)
            x_map = lambda i, j: (i, 0)
            w_map = lambda i, j: (j, 0)
            o_map = lambda i, j: (i, j)
        else:
            grid = (gj, gi)
            x_map = lambda j, i: (i, 0)
            w_map = lambda j, i: (j, 0)
            o_map = lambda j, i: (i, j)

        out_p = pl.pallas_call(
            _wl_matmul_single_k_kernel,
            out_shape=jax.ShapeDtypeStruct((m_p, n_p), out_dtype),
            grid_spec=pltpu.PrefetchScalarGridSpec(
                num_scalar_prefetch=0,
                grid=grid,
                in_specs=[pl.BlockSpec((tm_, k_p), x_map),
                          pl.BlockSpec((tn_, k_p), w_map)],
                out_specs=pl.BlockSpec((tm_, tn_), o_map),
            ),
            compiler_params=pltpu.CompilerParams(
                dimension_semantics=("parallel", "parallel"),
                vmem_limit_bytes=budget),
            cost_estimate=pl.CostEstimate(
                flops=flops,
                transcendentals=0,
                bytes_accessed=(min(total_a, total_b) * mxu_bytes
                                + m_p * n_p * out_bytes)),
        )(x_p, w_soft)
    else:
        grid = (m_p // tm_, n_p // tn_, k_p // tk_)
        if out_dtype == jnp.float32:
            kernel = _wl_matmul_acc_out_kernel
            scratch = []
        else:
            kernel = _wl_matmul_acc_scratch_kernel
            scratch = [pltpu.VMEM((tm_, tn_), jnp.float32)]

        out_p = pl.pallas_call(
            kernel,
            out_shape=jax.ShapeDtypeStruct((m_p, n_p), out_dtype),
            grid_spec=pltpu.PrefetchScalarGridSpec(
                num_scalar_prefetch=0,
                grid=grid,
                in_specs=[pl.BlockSpec((tm_, tk_), lambda i, j, k: (i, k)),
                          pl.BlockSpec((tn_, tk_), lambda i, j, k: (j, k))],
                out_specs=pl.BlockSpec((tm_, tn_), lambda i, j, k: (i, j)),
                scratch_shapes=scratch,
            ),
            compiler_params=pltpu.CompilerParams(
                dimension_semantics=("parallel", "parallel", "arbitrary"),
                vmem_limit_bytes=budget),
            cost_estimate=pl.CostEstimate(
                flops=flops,
                transcendentals=0,
                bytes_accessed=((m_p * k_p * (n_p // tn_)
                                 + n_p * k_p * (m_p // tm_)) * mxu_bytes
                                + m_p * n_p * out_bytes)),
        )(x_p, w_soft)

    out2d = out_p[:m, :out_features]
    return out2d.reshape(lead_shape + (out_features,))


def init_weight(key, in_features, out_features, dtype=jnp.float32):
    # Mirror nn.init.kaiming_uniform_(w, a=sqrt(5)):
    # gain = sqrt(2/(1+a^2)) = sqrt(1/3); bound = gain*sqrt(3/fan_in) = sqrt(1/fan_in)
    bound = math.sqrt(1.0 / in_features)
    return jax.random.uniform(
        key, (out_features, in_features), dtype=dtype, minval=-bound, maxval=bound
    )


if __name__ == "__main__":
    in_features = 32
    out_features = 16
    batch, seq = 2, 8

    key = jax.random.PRNGKey(0)
    kx, kw = jax.random.split(key)

    x = jax.random.normal(kx, (batch, seq, in_features), dtype=jnp.float32)
    w = init_weight(kw, in_features, out_features)

    out = weighted_linear(x, w)
    jax.block_until_ready(out)

    # Reference (exact f32 math, same as the PyTorch forward).  Kernel feeds
    # the MXU bf16 operands (f32 accumulation), so allow bf16-level tolerance.
    w_soft_ref = jax.nn.softmax(w.astype(jnp.float32), axis=-1)
    ref = jnp.einsum("bsk,nk->bsn", x, w_soft_ref)

    assert out.shape == (batch, seq, out_features)
    assert jnp.allclose(out, ref, atol=1e-2, rtol=1e-2), (
        float(jnp.max(jnp.abs(out - ref))))

    print("KERNEL_OK")
</pallas_src>

<mosaic_0001>
module attributes {stable_mosaic.version = 11 : i64} {
  func.func @_softmax_rows_kernel(%arg0: i32, %arg1: memref<128x128xf32, #tpu.memory_space<vmem>>, %arg2: memref<128x128xbf16, #tpu.memory_space<vmem>>) attributes {dimension_semantics = [#tpu.dimension_semantics<parallel>], iteration_bounds = array<i64: 1>, scalar_prefetch = 0 : i64, scratch_operands = 0 : i64, tpu.core_type = #tpu.core_type<tc>, window_params = [{transform_indices = @transform_0, window_bounds = array<i64: 128, 128>}, {transform_indices = @transform_1, window_bounds = array<i64: 128, 128>}]} {
    %c0 = arith.constant 0 : index
    %c0_0 = arith.constant 0 : index
    %0 = vector.load %arg1[%c0, %c0_0] : memref<128x128xf32, #tpu.memory_space<vmem>>, vector<128x128xf32>
    %cst = arith.constant dense<0xFF800000> : vector<128xf32>
    %1 = vector.multi_reduction <maximumf>, %0, %cst [1] : vector<128x128xf32> to vector<128xf32>
    %2 = vector.shape_cast %1 : vector<128xf32> to vector<128x1xf32>
    %3 = vector.broadcast %2 : vector<128x1xf32> to vector<128x128xf32>
    %4 = arith.subf %0, %3 : vector<128x128xf32>
    %5 = math.exp %4 : vector<128x128xf32>
    %cst_1 = arith.constant dense<0.000000e+00> : vector<128xf32>
    %6 = vector.multi_reduction <add>, %5, %cst_1 [1] : vector<128x128xf32> to vector<128xf32>
    %7 = vector.shape_cast %6 : vector<128xf32> to vector<128x1xf32>
    %8 = tpu.reciprocal %7 {approx = true} : vector<128x1xf32> -> vector<128x1xf32>
    %9 = vector.broadcast %8 : vector<128x1xf32> to vector<128x128xf32>
    %10 = arith.mulf %5, %9 : vector<128x128xf32>
    %11 = arith.truncf %10 : vector<128x128xf32> to vector<128x128xbf16>
    %c0_2 = arith.constant 0 : index
    %c0_3 = arith.constant 0 : index
    %12 = vector.load %arg2[%c0_2, %c0_3] : memref<128x128xbf16, #tpu.memory_space<vmem>>, vector<128x128xbf16>
    tpu.vector_store %arg2[%c0_2, %c0_3], %11 {strides = array<i32>} : memref<128x128xbf16, #tpu.memory_space<vmem>>, vector<128x128xbf16>,
    return
  }
  func.func @transform_0(%arg0: i32) -> (i32, i32) {
    %c0_i32 = arith.constant 0 : i32
    %c0_i32_0 = arith.constant 0 : i32
    return %arg0, %c0_i32 : i32, i32
  }
  func.func @transform_1(%arg0: i32) -> (i32, i32) {
    %c0_i32 = arith.constant 0 : i32
    %c0_i32_0 = arith.constant 0 : i32
    return %arg0, %c0_i32 : i32, i32
  }
}

</mosaic_0001>

<llo_original>
// kernel: tpu_custom_call.1
$region0: #{tpu_custom_call.1}
  #allocation0 [shape = 'u32[]', space=smem, size = 0x4, offset = 0x4, fixed_abs, tag = 'smem constant byte address 0x4 - core index']
  #allocation1 [shape = 'u32[72,128]{1,0:T(1,128)}', space=vmem, size = 0x9000, scoped, tag = 'internal scratch']
  %s0 = inlined_call_operand.hbm [shape: f32[128,128], index: 0, kind: input, shape index: {}]
  %s1 = inlined_call_operand.hbm [shape: bf16[128,128], index: 1, kind: output, shape index: {}]
  %s2 = sld [smem:[#allocation0]]
  $region18: #{tpu_custom_call.1} parent=0
    _
  %s4 = ssub.s32 1, %s2
  %s5 = scalar_select 0, %s4, %s2
  $region1: #{tpu_custom_call.1} parent=0
    #allocation2 [shape = 'u8[65536]{0}', space=vmem, size = 0x10000, scoped, tag = 'input window, operand 0, single buffered']
    #allocation3 [shape = 's32[1]{0}', space=sflag, size = 0x4, scoped, tag = 'scoped memory for tpu_custom_call.1']
    #allocation4 [shape = 's32[1]{0}', space=sflag, size = 0x4, scoped, tag = 'scoped memory for tpu_custom_call.1']
    #allocation5 [shape = 'u8[32768]{0}', space=vmem, size = 0x8000, scoped, tag = 'output window, operand 0, single buffered']
    %6 = vsyncpa [#allocation3], 0
    %7 = vsyncpa [#allocation4], 0
    // Predicated region
    $region2: #{tpu_custom_call.1} parent=1 // pred_check
      _
    $region3: #{tpu_custom_call.1} parent=1 // pred_check_branch
      %9 = sbr.rel (0) target = $region5
    $region4: #{tpu_custom_call.1} parent=1 // pred_region
      %11 = vsyncadd [#allocation3], 0
      %s12 = sshll.u32 %s0, 4
      %s13 = int_to_ptr.hbm [resolvable:$true] %s12
      %s14 = sshll.u32 [#allocation2], 4
      %s15 = int_to_ptr.vmem [resolvable:$true] %s14
      %20 = dma.hbm_to_vmem [thread:$0]  %s13, 2048, %s15, [#allocation3], 128, 128, 8
    $region5: #{tpu_custom_call.1} parent=1 // pred_fallthru
      _
    // Predicated region
    $region6: #{tpu_custom_call.1} parent=1 // pred_check
      _
    $region7: #{tpu_custom_call.1} parent=1 // pred_check_branch
      %22 = sbr.rel (0) target = $region9
    $region8: #{tpu_custom_call.1} parent=1 // pred_region
      %24 = dma.done [#allocation3], 2048
    $region9: #{tpu_custom_call.1} parent=1 // pred_fallthru
      _
    %v25 = vld [vmem:[#allocation2] sm:$0xff]
    %v26 = vld [vmem:[#allocation2 + $0x8] sm:$0xff]
    %v27 = vld [vmem:[#allocation2 + $0x10] sm:$0xff]
    %v28 = vld [vmem:[#allocation2 + $0x18] sm:$0xff]
    %v29 = vld [vmem:[#allocation2 + $0x20] sm:$0xff]
    %v30 = vld [vmem:[#allocation2 + $0x28] sm:$0xff]
    %v31 = vld [vmem:[#allocation2 + $0x30] sm:$0xff]
    %v32 = vld [vmem:[#allocation2 + $0x38] sm:$0xff]
    %v33 = vld [vmem:[#allocation2 + $0x40] sm:$0xff]
    %v34 = vld [vmem:[#allocation2 + $0x48] sm:$0xff]
    %v35 = vld [vmem:[#allocation2 + $0x50] sm:$0xff]
    %v36 = vld [vmem:[#allocation2 + $0x58] sm:$0xff]
    %v37 = vld [vmem:[#allocation2 + $0x60] sm:$0xff]
    %v38 = vld [vmem:[#allocation2 + $0x68] sm:$0xff]
    %v39 = vld [vmem:[#allocation2 + $0x70] sm:$0xff]
    %v40 = vld [vmem:[#allocation2 + $0x78] sm:$0xff]
    %41 = vmax.xlane.f32.xlu0 %v25
    %v42 = vpop.xlane.xlu0 %41
    %43 = vmax.xlane.f32.xlu0 %v26
    %v44 = vpop.xlane.xlu0 %43
    %45 = vmax.xlane.f32.xlu0 %v27
    %v46 = vpop.xlane.xlu0 %45
    %47 = vmax.xlane.f32.xlu0 %v28
    %v48 = vpop.xlane.xlu0 %47
    %49 = vmax.xlane.f32.xlu0 %v29
    %v50 = vpop.xlane.xlu0 %49
    %51 = vmax.xlane.f32.xlu0 %v30
    %v52 = vpop.xlane.xlu0 %51
    %53 = vmax.xlane.f32.xlu0 %v31
    %v54 = vpop.xlane.xlu0 %53
    %55 = vmax.xlane.f32.xlu0 %v32
    %v56 = vpop.xlane.xlu0 %55
    %57 = vmax.xlane.f32.xlu0 %v33
    %v58 = vpop.xlane.xlu0 %57
    %59 = vmax.xlane.f32.xlu0 %v34
    %v60 = vpop.xlane.xlu0 %59
    %61 = vmax.xlane.f32.xlu0 %v35
    %v62 = vpop.xlane.xlu0 %61
    %63 = vmax.xlane.f32.xlu0 %v36
    %v64 = vpop.xlane.xlu0 %63
    %65 = vmax.xlane.f32.xlu0 %v37
    %v66 = vpop.xlane.xlu0 %65
    %67 = vmax.xlane.f32.xlu0 %v38
    %v68 = vpop.xlane.xlu0 %67
    %69 = vmax.xlane.f32.xlu0 %v39
    %v70 = vpop.xlane.xlu0 %69
    %71 = vmax.xlane.f32.xlu0 %v40
    %v72 = vpop.xlane.xlu0 %71
    %v73 = vsub.f32 %v25, %v42
    %v74 = vsub.f32 %v26, %v44
    %v75 = vsub.f32 %v27, %v46
    %v76 = vsub.f32 %v28, %v48
    %v77 = vsub.f32 %v29, %v50
    %v78 = vsub.f32 %v30, %v52
    %v79 = vsub.f32 %v31, %v54
    %v80 = vsub.f32 %v32, %v56
    %v81 = vsub.f32 %v33, %v58
    %v82 = vsub.f32 %v34, %v60
    %v83 = vsub.f32 %v35, %v62
    %v84 = vsub.f32 %v36, %v64
    %v85 = vsub.f32 %v37, %v66
    %v86 = vsub.f32 %v38, %v68
    %v87 = vsub.f32 %v39, %v70
    %v88 = vsub.f32 %v40, %v72
    %v89 = vmul.f32 %v73, 1.442695
    %v90 = vpow.pop %v89
    %v91 = vmul.f32 %v74, 1.442695
    %v92 = vpow.pop %v91
    %v93 = vmul.f32 %v75, 1.442695
    %v94 = vpow.pop %v93
    %v95 = vmul.f32 %v76, 1.442695
    %v96 = vpow.pop %v95
    %v97 = vmul.f32 %v77, 1.442695
    %v98 = vpow.pop %v97
    %v99 = vmul.f32 %v78, 1.442695
    %v100 = vpow.pop %v99
    %v101 = vmul.f32 %v79, 1.442695
    %v102 = vpow.pop %v101
    %v103 = vmul.f32 %v80, 1.442695
    %v104 = vpow.pop %v103
    %v105 = vmul.f32 %v81, 1.442695
    %v106 = vpow.pop %v105
    %v107 = vmul.f32 %v82, 1.442695
    %v108 = vpow.pop %v107
    %v109 = vmul.f32 %v83, 1.442695
    %v110 = vpow.pop %v109
    %v111 = vmul.f32 %v84, 1.442695
    %v112 = vpow.pop %v111
    %v113 = vmul.f32 %v85, 1.442695
    %v114 = vpow.pop %v113
    %v115 = vmul.f32 %v86, 1.442695
    %v116 = vpow.pop %v115
    %v117 = vmul.f32 %v87, 1.442695
    %v118 = vpow.pop %v117
    %v119 = vmul.f32 %v88, 1.442695
    %v120 = vpow.pop %v119
    %121 = vadd.xlane.f32.xlu0 %v90
    %v122 = vpop.xlane.xlu0 %121
    %123 = vadd.xlane.f32.xlu0 %v92
    %v124 = vpop.xlane.xlu0 %123
    %125 = vadd.xlane.f32.xlu0 %v94
    %v126 = vpop.xlane.xlu0 %125
    %127 = vadd.xlane.f32.xlu0 %v96
    %v128 = vpop.xlane.xlu0 %127
    %129 = vadd.xlane.f32.xlu0 %v98
    %v130 = vpop.xlane.xlu0 %129
    %131 = vadd.xlane.f32.xlu0 %v100
    %v132 = vpop.xlane.xlu0 %131
    %133 = vadd.xlane.f32.xlu0 %v102
    %v134 = vpop.xlane.xlu0 %133
    %135 = vadd.xlane.f32.xlu0 %v104
    %v136 = vpop.xlane.xlu0 %135
    %137 = vadd.xlane.f32.xlu0 %v106
    %v138 = vpop.xlane.xlu0 %137
    %139 = vadd.xlane.f32.xlu0 %v108
    %v140 = vpop.xlane.xlu0 %139
    %141 = vadd.xlane.f32.xlu0 %v110
    %v142 = vpop.xlane.xlu0 %141
    %143 = vadd.xlane.f32.xlu0 %v112
    %v144 = vpop.xlane.xlu0 %143
    %145 = vadd.xlane.f32.xlu0 %v114
    %v146 = vpop.xlane.xlu0 %145
    %147 = vadd.xlane.f32.xlu0 %v116
    %v148 = vpop.xlane.xlu0 %147
    %149 = vadd.xlane.f32.xlu0 %v118
    %v150 = vpop.xlane.xlu0 %149
    %151 = vadd.xlane.f32.xlu0 %v120
    %v152 = vpop.xlane.xlu0 %151
    %v153 = vrcp.pop %v122
    %v154 = vrcp.pop %v124
    %v155 = vrcp.pop %v126
    %v156 = vrcp.pop %v128
    %v157 = vrcp.pop %v130
    %v158 = vrcp.pop %v132
    %v159 = vrcp.pop %v134
    %v160 = vrcp.pop %v136
    %v161 = vrcp.pop %v138
    %v162 = vrcp.pop %v140
    %v163 = vrcp.pop %v142
    %v164 = vrcp.pop %v144
    %v165 = vrcp.pop %v146
    %v166 = vrcp.pop %v148
    %v167 = vrcp.pop %v150
    %v168 = vrcp.pop %v152
    %v169 = vmul.f32 %v90, %v153
    %v170 = vmul.f32 %v92, %v154
    %v171 = vmul.f32 %v94, %v155
    %v172 = vmul.f32 %v96, %v156
    %v173 = vmul.f32 %v98, %v157
    %v174 = vmul.f32 %v100, %v158
    %v175 = vmul.f32 %v102, %v159
    %v176 = vmul.f32 %v104, %v160
    %v177 = vmul.f32 %v106, %v161
    %v178 = vmul.f32 %v108, %v162
    %v179 = vmul.f32 %v110, %v163
    %v180 = vmul.f32 %v112, %v164
    %v181 = vmul.f32 %v114, %v165
    %v182 = vmul.f32 %v116, %v166
    %v183 = vmul.f32 %v118, %v167
    %v184 = vmul.f32 %v120, %v168
    %v185 = vpack.c.bf16 %v169, %v169
    %v186 = vpack.c.bf16 %v170, %v170
    %v187 = vpack.c.bf16 %v171, %v171
    %v188 = vpack.c.bf16 %v172, %v172
    %v189 = vpack.c.bf16 %v173, %v173
    %v190 = vpack.c.bf16 %v174, %v174
    %v191 = vpack.c.bf16 %v175, %v175
    %v192 = vpack.c.bf16 %v176, %v176
    %v193 = vpack.c.bf16 %v177, %v177
    %v194 = vpack.c.bf16 %v178, %v178
    %v195 = vpack.c.bf16 %v179, %v179
    %v196 = vpack.c.bf16 %v180, %v180
    %v197 = vpack.c.bf16 %v181, %v181
    %v198 = vpack.c.bf16 %v182, %v182
    %v199 = vpack.c.bf16 %v183, %v183
    %v200 = vpack.c.bf16 %v184, %v184
    %201 = vst [vmem:[#allocation5] sm:$0xf] %v185
    %202 = vst [vmem:[#allocation5 + $0x4] sm:$0xf] %v186
    %203 = vst [vmem:[#allocation5 + $0x8] sm:$0xf] %v187
    %204 = vst [vmem:[#allocation5 + $0xc] sm:$0xf] %v188
    %205 = vst [vmem:[#allocation5 + $0x10] sm:$0xf] %v189
    %206 = vst [vmem:[#allocation5 + $0x14] sm:$0xf] %v190
    %207 = vst [vmem:[#allocation5 + $0x18] sm:$0xf] %v191
    %208 = vst [vmem:[#allocation5 + $0x1c] sm:$0xf] %v192
    %209 = vst [vmem:[#allocation5 + $0x20] sm:$0xf] %v193
    %210 = vst [vmem:[#allocation5 + $0x24] sm:$0xf] %v194
    %211 = vst [vmem:[#allocation5 + $0x28] sm:$0xf] %v195
    %212 = vst [vmem:[#allocation5 + $0x2c] sm:$0xf] %v196
    %213 = vst [vmem:[#allocation5 + $0x30] sm:$0xf] %v197
    %214 = vst [vmem:[#allocation5 + $0x34] sm:$0xf] %v198
    %215 = vst [vmem:[#allocation5 + $0x38] sm:$0xf] %v199
    %216 = vst [vmem:[#allocation5 + $0x3c] sm:$0xf] %v200
    // Predicated region
    $region10: #{tpu_custom_call.1} parent=1 // pred_check
      _
    $region11: #{tpu_custom_call.1} parent=1 // pred_check_branch
      %218 = sbr.rel (0) target = $region13
    $region12: #{tpu_custom_call.1} parent=1 // pred_region
      %220 = vsyncadd [#allocation4], 0
      %s221 = sshll.u32 [#allocation5], 4
      %s222 = int_to_ptr.vmem [resolvable:$true] %s221
      %s223 = sshll.u32 %s1, 4
      %s224 = int_to_ptr.hbm [resolvable:$true] %s223
      %229 = dma.vmem_to_hbm [thread:$0]  %s222, 1024, %s224, [#allocation4], 64, 64, 4
    $region13: #{tpu_custom_call.1} parent=1 // pred_fallthru
      _
    // Predicated region
    $region14: #{tpu_custom_call.1} parent=1 // pred_check
      _
    $region15: #{tpu_custom_call.1} parent=1 // pred_check_branch
      %231 = sbr.rel (0) target = $region17
    $region16: #{tpu_custom_call.1} parent=1 // pred_region
      %233 = dma.done [#allocation4], 1024
    $region17: #{tpu_custom_call.1} parent=1 // pred_fallthru
      _
    %234 = vsyncpa [#allocation3], 1
    %235 = vsyncpa [#allocation4], 1

</llo_original>
